<compile_context>
chip_gen: v5e
topology: v5e:2x2
jax: 0.10.0
libtpu: 0.0.40
codegen_flags: <defaults>
</compile_context>

<pallas_src>
import functools

import jax
import jax.numpy as jnp
import numpy as np
from jax import lax
from jax.experimental import pallas as pl
from jax.experimental.pallas import tpu as pltpu

# ----------------------------- config ---------------------------------------
GOAL_SIZE = 4
LL_STATE_SIZE = 16
TIMEFEAT = 0          # assert in the torch module: must be 0
LEAK2LL = False
PUSHER = 1
LOWLEVEL = True
SIZE_IN = 32          # total state feature dim
LANES = 128
PACK = LANES // SIZE_IN          # 4 state rows per lane-dense packed row

if LOWLEVEL and not LEAK2LL:
    SEG_LO, SEG_HI = GOAL_SIZE, GOAL_SIZE + LL_STATE_SIZE - TIMEFEAT   # [4, 20)
else:
    SEG_LO, SEG_HI = 0, SIZE_IN

EPS = 1e-2            # Normalizer eps (also initial count)
CLIP = 5.0            # Normalizer clip range

_TBP_MAX = 2048       # packed rows per tile -> 1 MiB f32 block (8192 state rows)
_VMEM_LIMIT = 32 * 1024 * 1024


# ------------------------------ kernels --------------------------------------
def _stats_update_kernel(x_ref, esum_ref, essq_ref, gsum_ref, gssq_ref,
                         esum_o, essq_o, gsum_o, gssq_o,
                         acc_s, acc_q,
                         *, do_enc, do_goal, tbp, valid_rows):
    """grid=(nb,), 'arbitrary'.  Accumulate lane-dense column sums of the packed
    batch into VMEM scratch; on the last step fold the 4 lane segments back to
    the 32 real columns and update the enc/goal running stats in place."""
    i = pl.program_id(0)
    nb = pl.num_programs(0)

    @pl.when(i == 0)
    def _init():
        acc_s[...] = jnp.zeros_like(acc_s)
        acc_q[...] = jnp.zeros_like(acc_q)

    x = x_ref[...].astype(jnp.float32)          # cast on load, lane-dense tile
    if valid_rows % tbp != 0:
        # Ragged last block: mask the Pallas-padded (garbage) packed rows.
        row = lax.broadcasted_iota(jnp.int32, x.shape, 0) + i * tbp
        x = jnp.where(row < valid_rows, x, 0.0)
    acc_s[...] += jnp.sum(x, axis=0, keepdims=True)
    acc_q[...] += jnp.sum(x * x, axis=0, keepdims=True)

    @pl.when(i == nb - 1)
    def _finalize():
        sp = acc_s[...]
        qp = acc_q[...]
        # Fold the PACK lane segments back onto the SIZE_IN original columns.
        s = sp[:, 0:SIZE_IN]
        q = qp[:, 0:SIZE_IN]
        for k in range(1, PACK):
            s = s + sp[:, k * SIZE_IN:(k + 1) * SIZE_IN]
            q = q + qp[:, k * SIZE_IN:(k + 1) * SIZE_IN]
        if do_enc:
            col = lax.broadcasted_iota(jnp.int32, (1, SIZE_IN), 1)
            seg = (col >= SEG_LO) & (col < SEG_HI)
            esum_o[...] = esum_ref[...] + jnp.where(seg, s, 0.0)
            essq_o[...] = essq_ref[...] + jnp.where(seg, q, 0.0)
        else:
            esum_o[...] = esum_ref[...]
            essq_o[...] = essq_ref[...]
        if do_goal:
            # goal_norm sees arm_pos.reshape(-1, GOAL): fold the two column
            # blocks [4:8] and [8:12] of the same full-width colsum.
            gsum_o[...] = (gsum_ref[...]
                           + s[:, GOAL_SIZE:2 * GOAL_SIZE]
                           + s[:, 2 * GOAL_SIZE:3 * GOAL_SIZE])
            gssq_o[...] = (gssq_ref[...]
                           + q[:, GOAL_SIZE:2 * GOAL_SIZE]
                           + q[:, 2 * GOAL_SIZE:3 * GOAL_SIZE])
        else:
            gsum_o[...] = gsum_ref[...]
            gssq_o[...] = gssq_ref[...]


def _normalize_kernel(cnt_ref, x_ref, esum_ref, essq_ref, o_ref):
    """grid=(nb,), 'parallel'.  Pure element-wise lane-dense normalize of the
    packed (tile, 128) block with the (possibly post-update) running stats."""
    x = x_ref[...].astype(jnp.float32)
    inv_cnt = 1.0 / cnt_ref[0]
    mean = esum_ref[...] * inv_cnt                          # (1, 32)
    var = essq_ref[...] * inv_cnt - mean * mean
    istd = lax.rsqrt(jnp.maximum(var, EPS * EPS))           # (1, 32)
    mean_l = jnp.concatenate([mean] * PACK, axis=1)         # (1, 128) lane-tiled
    istd_l = jnp.concatenate([istd] * PACK, axis=1)
    lane = lax.broadcasted_iota(jnp.int32, (1, LANES), 1)
    col = lane % SIZE_IN
    seg = (col >= SEG_LO) & (col < SEG_HI)                  # (1, 128)
    normed = jnp.clip((x - mean_l) * istd_l, -CLIP, CLIP)
    o_ref[...] = jnp.where(seg, normed, x).astype(o_ref.dtype)


# ------------------------------ wrappers -------------------------------------
def _pack_states(states):
    """(B, 32) -> (ceil(B/4), 128) lane-dense packed view (free when B%4==0)."""
    B, D = states.shape
    assert D == SIZE_IN
    pad = (-B) % PACK
    if pad:
        states = jnp.pad(states, ((0, pad), (0, 0)))   # rare tiny-tail fallback
    b4 = (B + pad) // PACK
    return states.reshape(b4, PACK * D), b4


def _tile_rows(b4):
    # Block sublane dim must be a multiple of 8 OR equal the full array dim.
    return b4 if b4 <= _TBP_MAX else _TBP_MAX


def _call_stats_update(xp, esum, essq, gsum, gssq, do_enc, do_goal):
    b4, L = xp.shape
    tbp = _tile_rows(b4)
    nb = pl.cdiv(b4, tbp)
    kernel = functools.partial(_stats_update_kernel, do_enc=do_enc,
                               do_goal=do_goal, tbp=tbp, valid_rows=b4)
    out_shape = (
        jax.ShapeDtypeStruct((1, SIZE_IN), jnp.float32),     # enc sum (padded)
        jax.ShapeDtypeStruct((1, SIZE_IN), jnp.float32),     # enc sumsq (padded)
        jax.ShapeDtypeStruct((1, GOAL_SIZE), jnp.float32),   # goal sum
        jax.ShapeDtypeStruct((1, GOAL_SIZE), jnp.float32),   # goal sumsq
    )
    grid_spec = pltpu.PrefetchScalarGridSpec(
        num_scalar_prefetch=0,
        grid=(nb,),
        in_specs=[
            pl.BlockSpec((tbp, L), lambda i: (i, 0)),          # packed states
            pl.BlockSpec((1, SIZE_IN), lambda i: (0, 0)),      # enc sum in
            pl.BlockSpec((1, SIZE_IN), lambda i: (0, 0)),      # enc sumsq in
            pl.BlockSpec((1, GOAL_SIZE), lambda i: (0, 0)),    # goal sum in
            pl.BlockSpec((1, GOAL_SIZE), lambda i: (0, 0)),    # goal sumsq in
        ],
        out_specs=(
            pl.BlockSpec((1, SIZE_IN), lambda i: (0, 0)),
            pl.BlockSpec((1, SIZE_IN), lambda i: (0, 0)),
            pl.BlockSpec((1, GOAL_SIZE), lambda i: (0, 0)),
            pl.BlockSpec((1, GOAL_SIZE), lambda i: (0, 0)),
        ),
        scratch_shapes=[
            pltpu.VMEM((1, LANES), jnp.float32),   # lane-dense colsum acc
            pltpu.VMEM((1, LANES), jnp.float32),   # lane-dense colsumsq acc
        ],
    )
    return pl.pallas_call(
        kernel,
        out_shape=out_shape,
        grid_spec=grid_spec,
        # running-stat buffers updated "in place" (donate params under jit).
        input_output_aliases={1: 0, 2: 1, 3: 2, 4: 3},
        compiler_params=pltpu.CompilerParams(
            dimension_semantics=("arbitrary",),
            vmem_limit_bytes=_VMEM_LIMIT),
    )(xp, esum, essq, gsum, gssq)


def _call_normalize(xp, esum, essq, count):
    b4, L = xp.shape
    tbn = _tile_rows(b4)
    nb = pl.cdiv(b4, tbn)
    cnt = jnp.reshape(jnp.asarray(count, jnp.float32), (1,))
    return pl.pallas_call(
        _normalize_kernel,
        out_shape=jax.ShapeDtypeStruct((b4, L), xp.dtype),
        grid_spec=pltpu.PrefetchScalarGridSpec(
            num_scalar_prefetch=0,
            grid=(nb,),
            in_specs=[
                pl.BlockSpec(memory_space=pltpu.MemorySpace.SMEM),   # count
                pl.BlockSpec((tbn, L), lambda i: (i, 0)),            # packed x
                pl.BlockSpec((1, SIZE_IN), lambda i: (0, 0)),        # enc sum
                pl.BlockSpec((1, SIZE_IN), lambda i: (0, 0)),        # enc sumsq
            ],
            out_specs=pl.BlockSpec((tbn, L), lambda i: (i, 0)),
        ),
        compiler_params=pltpu.CompilerParams(
            dimension_semantics=("parallel",),      # independent B-tiles (2 TCs)
            vmem_limit_bytes=_VMEM_LIMIT),
    )(cnt, xp, esum, essq)


# ------------------------- GlobalNormalizerWithTime --------------------------
def init_global_normalizer(size_in=SIZE_IN, lowlevel=LOWLEVEL):
    assert TIMEFEAT == 0, "time feature is not implemented"
    enc_size = (size_in if (LEAK2LL or not lowlevel) else LL_STATE_SIZE) - TIMEFEAT
    assert SEG_HI - SEG_LO == enc_size
    # enc running stats stored PADDED to the full state width so their columns
    # line up with the state columns they normalize (rest stays zero).
    return {
        "enc_sum": jnp.zeros((1, size_in), jnp.float32),
        "enc_sumsq": jnp.zeros((1, size_in), jnp.float32),
        "enc_count": jnp.asarray(EPS, jnp.float32),
        "goal_sum": jnp.zeros((1, GOAL_SIZE), jnp.float32),
        "goal_sumsq": jnp.zeros((1, GOAL_SIZE), jnp.float32),
        "goal_count": jnp.asarray(EPS, jnp.float32),
        "lowlevel": lowlevel,
        "enc_stop": False,     # GlobalNormalizerWithTime.stop_norm() stops enc
        "goal_stop": False,    # shared module-level goal_norm stop flag
    }


def global_normalizer_forward(params, states, update):
    """Functional forward; returns (encoded, new_params)."""
    B, D = states.shape
    assert D == SIZE_IN and TIMEFEAT == 0
    do_enc = bool(update) and not params["enc_stop"]
    do_goal = bool(update) and not params["goal_stop"]

    xp, _ = _pack_states(states)
    new_params = dict(params)

    if do_enc or do_goal:
        esum_n, essq_n, gsum_n, gssq_n = _call_stats_update(
            xp, params["enc_sum"], params["enc_sumsq"],
            params["goal_sum"], params["goal_sumsq"], do_enc, do_goal)
        if do_enc:
            new_params["enc_sum"] = esum_n
            new_params["enc_sumsq"] = essq_n
            new_params["enc_count"] = params["enc_count"] + float(B)
        if do_goal:
            new_params["goal_sum"] = gsum_n
            new_params["goal_sumsq"] = gssq_n
            new_params["goal_count"] = params["goal_count"] + float(2 * B)

    # torch semantics: Normalizer.update() then .normalize() -> post-update stats.
    out_p = _call_normalize(xp, new_params["enc_sum"], new_params["enc_sumsq"],
                            new_params["enc_count"])
    encoded = out_p.reshape(-1, SIZE_IN)
    if encoded.shape[0] != B:          # only when B % 4 != 0 (packed tail pad)
        encoded = encoded[:B]
    return encoded, new_params


# --------------------------- pure-JAX reference -------------------------------
def reference_forward(params, states, update):
    B = states.shape[0]
    x = states.astype(jnp.float32)
    col = jnp.arange(SIZE_IN)[None, :]
    seg = (col >= SEG_LO) & (col < SEG_HI)
    esum, essq, ecnt = params["enc_sum"], params["enc_sumsq"], params["enc_count"]
    gsum, gssq, gcnt = params["goal_sum"], params["goal_sumsq"], params["goal_count"]
    s = jnp.sum(x, axis=0, keepdims=True)
    q = jnp.sum(x * x, axis=0, keepdims=True)
    do_enc = bool(update) and not params["enc_stop"]
    do_goal = bool(update) and not params["goal_stop"]
    if do_enc:
        esum = esum + jnp.where(seg, s, 0.0)
        essq = essq + jnp.where(seg, q, 0.0)
        ecnt = ecnt + float(B)
    if do_goal:
        gsum = gsum + s[:, GOAL_SIZE:2 * GOAL_SIZE] + s[:, 2 * GOAL_SIZE:3 * GOAL_SIZE]
        gssq = gssq + q[:, GOAL_SIZE:2 * GOAL_SIZE] + q[:, 2 * GOAL_SIZE:3 * GOAL_SIZE]
        gcnt = gcnt + float(2 * B)
    mean = esum / ecnt
    var = essq / ecnt - mean * mean
    istd = 1.0 / jnp.sqrt(jnp.maximum(var, EPS * EPS))
    normed = jnp.clip((x - mean) * istd, -CLIP, CLIP)
    encoded = jnp.where(seg, normed, x).astype(states.dtype)
    new_params = dict(params)
    new_params.update(enc_sum=esum, enc_sumsq=essq, enc_count=ecnt,
                      goal_sum=gsum, goal_sumsq=gssq, goal_count=gcnt)
    return encoded, new_params


# ------------------------------------------------------------------------------
if __name__ == "__main__":
    key = jax.random.PRNGKey(0)
    B = 8
    states = jax.random.normal(key, (B, SIZE_IN), dtype=jnp.float32) * 2.0 + 0.5

    params = init_global_normalizer()

    # Pass 1: training-style call (update running stats + normalize).
    enc1, params1 = global_normalizer_forward(params, states, update=True)
    enc1 = jax.block_until_ready(enc1)

    # Pass 2: inference-style call (stats frozen).
    enc2, _ = global_normalizer_forward(params1, states, update=False)
    enc2 = jax.block_until_ready(enc2)

    # Pure-JAX reference of both passes.
    ref1, refp = reference_forward(params, states, update=True)
    ref2, _ = reference_forward(refp, states, update=False)

    np.testing.assert_allclose(np.asarray(enc1), np.asarray(ref1), rtol=1e-5, atol=1e-5)
    np.testing.assert_allclose(np.asarray(enc2), np.asarray(ref2), rtol=1e-5, atol=1e-5)
    np.testing.assert_allclose(np.asarray(params1["enc_sum"]),
                               np.asarray(refp["enc_sum"]), rtol=1e-5, atol=1e-5)
    np.testing.assert_allclose(np.asarray(params1["enc_sumsq"]),
                               np.asarray(refp["enc_sumsq"]), rtol=1e-5, atol=1e-5)
    np.testing.assert_allclose(np.asarray(params1["goal_sum"]),
                               np.asarray(refp["goal_sum"]), rtol=1e-5, atol=1e-5)
    np.testing.assert_allclose(np.asarray(params1["goal_sumsq"]),
                               np.asarray(refp["goal_sumsq"]), rtol=1e-5, atol=1e-5)
    assert enc1.shape == states.shape and enc2.shape == states.shape

    # Pass 3: B not a multiple of 4 exercises the packed-tail fallback.
    B2 = 6
    states2 = jax.random.normal(jax.random.PRNGKey(1), (B2, SIZE_IN),
                                dtype=jnp.float32) - 0.25
    enc3, params3 = global_normalizer_forward(params1, states2, update=True)
    enc3 = jax.block_until_ready(enc3)
    ref3, refp3 = reference_forward(refp, states2, update=True)
    np.testing.assert_allclose(np.asarray(enc3), np.asarray(ref3), rtol=1e-5, atol=1e-5)
    np.testing.assert_allclose(np.asarray(params3["enc_sum"]),
                               np.asarray(refp3["enc_sum"]), rtol=1e-5, atol=1e-5)
    np.testing.assert_allclose(np.asarray(params3["goal_sum"]),
                               np.asarray(refp3["goal_sum"]), rtol=1e-5, atol=1e-5)
    assert enc3.shape == states2.shape

    print("KERNEL_OK")
</pallas_src>

<mosaic_0001>
module attributes {stable_mosaic.version = 11 : i64} {
  func.func @_stats_update_kernel(%arg0: i32, %arg1: memref<2x128xf32, #tpu.memory_space<vmem>>, %arg2: memref<1x32xf32, #tpu.memory_space<vmem>>, %arg3: memref<1x32xf32, #tpu.memory_space<vmem>>, %arg4: memref<1x4xf32, #tpu.memory_space<vmem>>, %arg5: memref<1x4xf32, #tpu.memory_space<vmem>>, %arg6: memref<1x32xf32, #tpu.memory_space<vmem>>, %arg7: memref<1x32xf32, #tpu.memory_space<vmem>>, %arg8: memref<1x4xf32, #tpu.memory_space<vmem>>, %arg9: memref<1x4xf32, #tpu.memory_space<vmem>>, %arg10: memref<1x128xf32, #tpu.memory_space<vmem>>, %arg11: memref<1x128xf32, #tpu.memory_space<vmem>>) attributes {dimension_semantics = [#tpu.dimension_semantics<arbitrary>], iteration_bounds = array<i64: 1>, scalar_prefetch = 0 : i64, scratch_operands = 2 : i64, tpu.core_type = #tpu.core_type<tc>, window_params = [{transform_indices = @transform_0, window_bounds = array<i64: 2, 128>}, {pipeline_mode = #tpu.pipeline_mode<synchronous>, transform_indices = @transform_1, window_bounds = array<i64: 1, 32>}, {pipeline_mode = #tpu.pipeline_mode<synchronous>, transform_indices = @transform_2, window_bounds = array<i64: 1, 32>}, {pipeline_mode = #tpu.pipeline_mode<synchronous>, transform_indices = @transform_3, window_bounds = array<i64: 1, 4>}, {pipeline_mode = #tpu.pipeline_mode<synchronous>, transform_indices = @transform_4, window_bounds = array<i64: 1, 4>}, {pipeline_mode = #tpu.pipeline_mode<synchronous>, transform_indices = @transform_5, window_bounds = array<i64: 1, 32>}, {pipeline_mode = #tpu.pipeline_mode<synchronous>, transform_indices = @transform_6, window_bounds = array<i64: 1, 32>}, {pipeline_mode = #tpu.pipeline_mode<synchronous>, transform_indices = @transform_7, window_bounds = array<i64: 1, 4>}, {pipeline_mode = #tpu.pipeline_mode<synchronous>, transform_indices = @transform_8, window_bounds = array<i64: 1, 4>}]} {
    %c0_i32 = arith.constant 0 : i32
    %0 = arith.cmpi eq, %arg0, %c0_i32 : i32
    %1 = arith.extui %0 : i1 to i32
    %c0_i32_0 = arith.constant 0 : i32
    %2 = arith.cmpi ne, %1, %c0_i32_0 : i32
    scf.if %2 {
      %cst_13 = arith.constant 0.000000e+00 : f32
      %18 = vector.broadcast %cst_13 : f32 to vector<1x128xf32>
      %c0_14 = arith.constant 0 : index
      %c0_15 = arith.constant 0 : index
      %19 = vector.load %arg10[%c0_14, %c0_15] : memref<1x128xf32, #tpu.memory_space<vmem>>, vector<1x128xf32>
      tpu.vector_store %arg10[%c0_14, %c0_15], %18 {strides = array<i32>} : memref<1x128xf32, #tpu.memory_space<vmem>>, vector<1x128xf32>,
      %cst_16 = arith.constant 0.000000e+00 : f32
      %20 = vector.broadcast %cst_16 : f32 to vector<1x128xf32>
      %c0_17 = arith.constant 0 : index
      %c0_18 = arith.constant 0 : index
      %21 = vector.load %arg11[%c0_17, %c0_18] : memref<1x128xf32, #tpu.memory_space<vmem>>, vector<1x128xf32>
      tpu.vector_store %arg11[%c0_17, %c0_18], %20 {strides = array<i32>} : memref<1x128xf32, #tpu.memory_space<vmem>>, vector<1x128xf32>,
    } else {
    }
    %c0 = arith.constant 0 : index
    %c0_1 = arith.constant 0 : index
    %3 = vector.load %arg1[%c0, %c0_1] : memref<2x128xf32, #tpu.memory_space<vmem>>, vector<2x128xf32>
    %c0_2 = arith.constant 0 : index
    %c0_3 = arith.constant 0 : index
    %4 = vector.load %arg10[%c0_2, %c0_3] : memref<1x128xf32, #tpu.memory_space<vmem>>, vector<1x128xf32>
    %cst = arith.constant dense<0.000000e+00> : vector<128xf32>
    %5 = vector.multi_reduction <add>, %3, %cst [0] : vector<2x128xf32> to vector<128xf32>
    %6 = vector.shape_cast %5 : vector<128xf32> to vector<1x128xf32>
    %7 = arith.addf %4, %6 : vector<1x128xf32>
    %c0_4 = arith.constant 0 : index
    %c0_5 = arith.constant 0 : index
    %8 = vector.load %arg10[%c0_4, %c0_5] : memref<1x128xf32, #tpu.memory_space<vmem>>, vector<1x128xf32>
    tpu.vector_store %arg10[%c0_4, %c0_5], %7 {strides = array<i32>} : memref<1x128xf32, #tpu.memory_space<vmem>>, vector<1x128xf32>,
    %c0_6 = arith.constant 0 : index
    %c0_7 = arith.constant 0 : index
    %9 = vector.load %arg11[%c0_6, %c0_7] : memref<1x128xf32, #tpu.memory_space<vmem>>, vector<1x128xf32>
    %10 = arith.mulf %3, %3 : vector<2x128xf32>
    %cst_8 = arith.constant dense<0.000000e+00> : vector<128xf32>
    %11 = vector.multi_reduction <add>, %10, %cst_8 [0] : vector<2x128xf32> to vector<128xf32>
    %12 = vector.shape_cast %11 : vector<128xf32> to vector<1x128xf32>
    %13 = arith.addf %9, %12 : vector<1x128xf32>
    %c0_9 = arith.constant 0 : index
    %c0_10 = arith.constant 0 : index
    %14 = vector.load %arg11[%c0_9, %c0_10] : memref<1x128xf32, #tpu.memory_space<vmem>>, vector<1x128xf32>
    tpu.vector_store %arg11[%c0_9, %c0_10], %13 {strides = array<i32>} : memref<1x128xf32, #tpu.memory_space<vmem>>, vector<1x128xf32>,
    %c0_i32_11 = arith.constant 0 : i32
    %15 = arith.cmpi eq, %arg0, %c0_i32_11 : i32
    %16 = arith.extui %15 : i1 to i32
    %c0_i32_12 = arith.constant 0 : i32
    %17 = arith.cmpi ne, %16, %c0_i32_12 : i32
    scf.if %17 {
      %c0_13 = arith.constant 0 : index
      %c0_14 = arith.constant 0 : index
      %18 = vector.load %arg10[%c0_13, %c0_14] : memref<1x128xf32, #tpu.memory_space<vmem>>, vector<1x128xf32>
      %c0_15 = arith.constant 0 : index
      %c0_16 = arith.constant 0 : index
      %19 = vector.load %arg11[%c0_15, %c0_16] : memref<1x128xf32, #tpu.memory_space<vmem>>, vector<1x128xf32>
      %20 = vector.extract_strided_slice %18 {offsets = [0, 0], sizes = [1, 32], strides = [1, 1]} : vector<1x128xf32> to vector<1x32xf32>
      %21 = vector.extract_strided_slice %19 {offsets = [0, 0], sizes = [1, 32], strides = [1, 1]} : vector<1x128xf32> to vector<1x32xf32>
      %22 = vector.extract_strided_slice %18 {offsets = [0, 32], sizes = [1, 32], strides = [1, 1]} : vector<1x128xf32> to vector<1x32xf32>
      %23 = arith.addf %20, %22 : vector<1x32xf32>
      %24 = vector.extract_strided_slice %19 {offsets = [0, 32], sizes = [1, 32], strides = [1, 1]} : vector<1x128xf32> to vector<1x32xf32>
      %25 = arith.addf %21, %24 : vector<1x32xf32>
      %26 = vector.extract_strided_slice %18 {offsets = [0, 64], sizes = [1, 32], strides = [1, 1]} : vector<1x128xf32> to vector<1x32xf32>
      %27 = arith.addf %23, %26 : vector<1x32xf32>
      %28 = vector.extract_strided_slice %19 {offsets = [0, 64], sizes = [1, 32], strides = [1, 1]} : vector<1x128xf32> to vector<1x32xf32>
      %29 = arith.addf %25, %28 : vector<1x32xf32>
      %30 = vector.extract_strided_slice %18 {offsets = [0, 96], sizes = [1, 32], strides = [1, 1]} : vector<1x128xf32> to vector<1x32xf32>
      %31 = arith.addf %27, %30 : vector<1x32xf32>
      %32 = vector.extract_strided_slice %19 {offsets = [0, 96], sizes = [1, 32], strides = [1, 1]} : vector<1x128xf32> to vector<1x32xf32>
      %33 = arith.addf %29, %32 : vector<1x32xf32>
      %34 = tpu.iota {dimensions = array<i32: 1>} : vector<1x32xi32>
      %c4_i32 = arith.constant 4 : i32
      %35 = vector.broadcast %c4_i32 : i32 to vector<1x32xi32>
      %36 = arith.cmpi sge, %34, %35 : vector<1x32xi32>
      %c20_i32 = arith.constant 20 : i32
      %37 = vector.broadcast %c20_i32 : i32 to vector<1x32xi32>
      %38 = arith.cmpi slt, %34, %37 : vector<1x32xi32>
      %39 = arith.andi %36, %38 : vector<1x32xi1>
      %c0_17 = arith.constant 0 : index
      %c0_18 = arith.constant 0 : index
      %40 = vector.load %arg2[%c0_17, %c0_18] : memref<1x32xf32, #tpu.memory_space<vmem>>, vector<1x32xf32>
      %cst_19 = arith.constant 0.000000e+00 : f32
      %41 = vector.broadcast %cst_19 : f32 to vector<1x32xf32>
      %42 = arith.select %39, %31, %41 : vector<1x32xi1>, vector<1x32xf32>
      %43 = arith.addf %40, %42 : vector<1x32xf32>
      %c0_20 = arith.constant 0 : index
      %c0_21 = arith.constant 0 : index
      %44 = vector.load %arg6[%c0_20, %c0_21] : memref<1x32xf32, #tpu.memory_space<vmem>>, vector<1x32xf32>
      tpu.vector_store %arg6[%c0_20, %c0_21], %43 {strides = array<i32>} : memref<1x32xf32, #tpu.memory_space<vmem>>, vector<1x32xf32>,
      %c0_22 = arith.constant 0 : index
      %c0_23 = arith.constant 0 : index
      %45 = vector.load %arg3[%c0_22, %c0_23] : memref<1x32xf32, #tpu.memory_space<vmem>>, vector<1x32xf32>
      %cst_24 = arith.constant 0.000000e+00 : f32
      %46 = vector.broadcast %cst_24 : f32 to vector<1x32xf32>
      %47 = arith.select %39, %33, %46 : vector<1x32xi1>, vector<1x32xf32>
      %48 = arith.addf %45, %47 : vector<1x32xf32>
      %c0_25 = arith.constant 0 : index
      %c0_26 = arith.constant 0 : index
      %49 = vector.load %arg7[%c0_25, %c0_26] : memref<1x32xf32, #tpu.memory_space<vmem>>, vector<1x32xf32>
      tpu.vector_store %arg7[%c0_25, %c0_26], %48 {strides = array<i32>} : memref<1x32xf32, #tpu.memory_space<vmem>>, vector<1x32xf32>,
      %c0_27 = arith.constant 0 : index
      %c0_28 = arith.constant 0 : index
      %50 = vector.load %arg4[%c0_27, %c0_28] : memref<1x4xf32, #tpu.memory_space<vmem>>, vector<1x4xf32>
      %51 = vector.extract_strided_slice %31 {offsets = [0, 4], sizes = [1, 4], strides = [1, 1]} : vector<1x32xf32> to vector<1x4xf32>
      %52 = arith.addf %50, %51 : vector<1x4xf32>
      %53 = vector.extract_strided_slice %31 {offsets = [0, 8], sizes = [1, 4], strides = [1, 1]} : vector<1x32xf32> to vector<1x4xf32>
      %54 = arith.addf %52, %53 : vector<1x4xf32>
      %c0_29 = arith.constant 0 : index
      %c0_30 = arith.constant 0 : index
      %55 = vector.load %arg8[%c0_29, %c0_30] : memref<1x4xf32, #tpu.memory_space<vmem>>, vector<1x4xf32>
      tpu.vector_store %arg8[%c0_29, %c0_30], %54 {strides = array<i32>} : memref<1x4xf32, #tpu.memory_space<vmem>>, vector<1x4xf32>,
      %c0_31 = arith.constant 0 : index
      %c0_32 = arith.constant 0 : index
      %56 = vector.load %arg5[%c0_31, %c0_32] : memref<1x4xf32, #tpu.memory_space<vmem>>, vector<1x4xf32>
      %57 = vector.extract_strided_slice %33 {offsets = [0, 4], sizes = [1, 4], strides = [1, 1]} : vector<1x32xf32> to vector<1x4xf32>
      %58 = arith.addf %56, %57 : vector<1x4xf32>
      %59 = vector.extract_strided_slice %33 {offsets = [0, 8], sizes = [1, 4], strides = [1, 1]} : vector<1x32xf32> to vector<1x4xf32>
      %60 = arith.addf %58, %59 : vector<1x4xf32>
      %c0_33 = arith.constant 0 : index
      %c0_34 = arith.constant 0 : index
      %61 = vector.load %arg9[%c0_33, %c0_34] : memref<1x4xf32, #tpu.memory_space<vmem>>, vector<1x4xf32>
      tpu.vector_store %arg9[%c0_33, %c0_34], %60 {strides = array<i32>} : memref<1x4xf32, #tpu.memory_space<vmem>>, vector<1x4xf32>,
    } else {
    }
    return
  }
  func.func @transform_0(%arg0: i32) -> (i32, i32) {
    %c0_i32 = arith.constant 0 : i32
    %c0_i32_0 = arith.constant 0 : i32
    return %arg0, %c0_i32 : i32, i32
  }
  func.func @transform_1(%arg0: i32) -> (i32, i32) {
    %c0_i32 = arith.constant 0 : i32
    %c0_i32_0 = arith.constant 0 : i32
    %c0_i32_1 = arith.constant 0 : i32
    return %c0_i32, %c0_i32_0 : i32, i32
  }
  func.func @transform_2(%arg0: i32) -> (i32, i32) {
    %c0_i32 = arith.constant 0 : i32
    %c0_i32_0 = arith.constant 0 : i32
    %c0_i32_1 = arith.constant 0 : i32
    return %c0_i32, %c0_i32_0 : i32, i32
  }
  func.func @transform_3(%arg0: i32) -> (i32, i32) {
    %c0_i32 = arith.constant 0 : i32
    %c0_i32_0 = arith.constant 0 : i32
    %c0_i32_1 = arith.constant 0 : i32
    return %c0_i32, %c0_i32_0 : i32, i32
  }
  func.func @transform_4(%arg0: i32) -> (i32, i32) {
    %c0_i32 = arith.constant 0 : i32
    %c0_i32_0 = arith.constant 0 : i32
    %c0_i32_1 = arith.constant 0 : i32
    return %c0_i32, %c0_i32_0 : i32, i32
  }
  func.func @transform_5(%arg0: i32) -> (i32, i32) {
    %c0_i32 = arith.constant 0 : i32
    %c0_i32_0 = arith.constant 0 : i32
    %c0_i32_1 = arith.constant 0 : i32
    return %c0_i32, %c0_i32_0 : i32, i32
  }
  func.func @transform_6(%arg0: i32) -> (i32, i32) {
    %c0_i32 = arith.constant 0 : i32
    %c0_i32_0 = arith.constant 0 : i32
    %c0_i32_1 = arith.constant 0 : i32
    return %c0_i32, %c0_i32_0 : i32, i32
  }
  func.func @transform_7(%arg0: i32) -> (i32, i32) {
    %c0_i32 = arith.constant 0 : i32
    %c0_i32_0 = arith.constant 0 : i32
    %c0_i32_1 = arith.constant 0 : i32
    return %c0_i32, %c0_i32_0 : i32, i32
  }
  func.func @transform_8(%arg0: i32) -> (i32, i32) {
    %c0_i32 = arith.constant 0 : i32
    %c0_i32_0 = arith.constant 0 : i32
    %c0_i32_1 = arith.constant 0 : i32
    return %c0_i32, %c0_i32_0 : i32, i32
  }
}

</mosaic_0001>

<llo_original>
// kernel: tpu_custom_call.1
$region0: #{tpu_custom_call.1}
  #allocation0 [shape = 'u32[]', space=smem, size = 0x4, offset = 0x4, fixed_abs, tag = 'smem constant byte address 0x4 - core index']
  #allocation1 [shape = 'u32[72,128]{1,0:T(1,128)}', space=vmem, size = 0x9000, scoped, tag = 'internal scratch']
  #allocation2 [shape = 'f32[1,128]{1,0:T(1,128)}', space=vmem, size = 0x200, scoped, tag = 'scratch operand']
  #allocation3 [shape = 'f32[1,128]{1,0:T(1,128)}', space=vmem, size = 0x200, scoped, tag = 'scratch operand']
  %s0 = inlined_call_operand.vmem [shape: f32[2,128], index: 0, kind: input, shape index: {}]
  %s1 = inlined_call_operand.hbm [shape: f32[1,32], index: 1, kind: input, shape index: {}, may-alias: {1,5}]
  %s2 = inlined_call_operand.hbm [shape: f32[1,32], index: 2, kind: input, shape index: {}, may-alias: {2,6}]
  %s3 = inlined_call_operand.hbm [shape: f32[1,4], index: 3, kind: input, shape index: {}, may-alias: {3,7}]
  %s4 = inlined_call_operand.hbm [shape: f32[1,4], index: 4, kind: input, shape index: {}, may-alias: {4,8}]
  %s5 = inlined_call_operand.hbm [shape: f32[1,32], index: 5, kind: output, shape index: {0}, may-alias: {1,5}]
  %s6 = inlined_call_operand.hbm [shape: f32[1,32], index: 6, kind: output, shape index: {1}, may-alias: {2,6}]
  %s7 = inlined_call_operand.hbm [shape: f32[1,4], index: 7, kind: output, shape index: {2}, may-alias: {3,7}]
  %s8 = inlined_call_operand.hbm [shape: f32[1,4], index: 8, kind: output, shape index: {3}, may-alias: {4,8}]
  %9 = xla_tuple %s5, %s6, %s7, %s8
  %s10 = sld [smem:[#allocation0]]
  $region78: #{tpu_custom_call.1} parent=0
    _
  %s12 = ssub.s32 1, %s10
  %s13 = scalar_select 0, %s12, %s10
  $region1: #{tpu_custom_call.1} parent=0
    #allocation4 [shape = 'u8[512]{0}', space=vmem, size = 0x400, scoped, tag = 'input window, operand 1, single buffered']
    #allocation5 [shape = 's32[1]{0}', space=sflag, size = 0x4, scoped, tag = 'scoped memory for tpu_custom_call.1']
    #allocation6 [shape = 's32[1]{0}', space=sflag, size = 0x4, scoped, tag = 'scoped memory for tpu_custom_call.1']
    #allocation7 [shape = 'u8[512]{0}', space=vmem, size = 0x400, scoped, tag = 'input window, operand 2, single buffered']
    #allocation8 [shape = 's32[1]{0}', space=sflag, size = 0x4, scoped, tag = 'scoped memory for tpu_custom_call.1']
    #allocation9 [shape = 'u8[512]{0}', space=vmem, size = 0x400, scoped, tag = 'input window, operand 3, single buffered']
    #allocation10 [shape = 'u8[512]{0}', space=vmem, size = 0x400, scoped, tag = 'input window, operand 4, single buffered']
    #allocation11 [shape = 's32[1]{0}', space=sflag, size = 0x4, scoped, tag = 'scoped memory for tpu_custom_call.1']
    #allocation12 [shape = 'u8[512]{0}', space=vmem, size = 0x400, scoped, tag = 'output window, operand 0, single buffered']
    #allocation13 [shape = 'u8[512]{0}', space=vmem, size = 0x400, scoped, tag = 'output window, operand 1, single buffered']
    #allocation14 [shape = 's32[1]{0}', space=sflag, size = 0x4, scoped, tag = 'scoped memory for tpu_custom_call.1']
    #allocation15 [shape = 'u8[512]{0}', space=vmem, size = 0x400, scoped, tag = 'output window, operand 2, single buffered']
    #allocation16 [shape = 'u8[512]{0}', space=vmem, size = 0x400, scoped, tag = 'output window, operand 3, single buffered']
    #allocation17 [shape = 's32[1]{0}', space=sflag, size = 0x4, scoped, tag = 'scoped memory for tpu_custom_call.1']
    %14 = vsyncpa [#allocation5], 0
    %15 = vsyncpa [#allocation8], 0
    %16 = vsyncpa [#allocation11], 0
    %17 = vsyncpa [#allocation6], 0
    %18 = vsyncpa [#allocation14], 0
    %19 = vsyncpa [#allocation17], 0
    // Predicated region
    $region2: #{tpu_custom_call.1} parent=1 // pred_check
      _
    $region3: #{tpu_custom_call.1} parent=1 // pred_check_branch
      %21 = sbr.rel (0) target = $region5
    $region4: #{tpu_custom_call.1} parent=1 // pred_region
      _
    $region5: #{tpu_custom_call.1} parent=1 // pred_fallthru
      _
    // Predicated region
    $region6: #{tpu_custom_call.1} parent=1 // pred_check
      _
    $region7: #{tpu_custom_call.1} parent=1 // pred_check_branch
      %23 = sbr.rel (0) target = $region9
    $region8: #{tpu_custom_call.1} parent=1 // pred_region
      %25 = vsyncadd [#allocation5], 0
      %s27 = sshll.u32 %s1, 4
      %s28 = int_to_ptr.hbm [resolvable:$true] %s27
      %s29 = sshll.u32 [#allocation4], 4
      %s30 = int_to_ptr.vmem [resolvable:$true] %s29
      %32 = dma.hbm_to_vmem [thread:$0]  %s28, 16, %s30, [#allocation5]
    $region9: #{tpu_custom_call.1} parent=1 // pred_fallthru
      _
    // Predicated region
    $region10: #{tpu_custom_call.1} parent=1 // pred_check
      _
    $region11: #{tpu_custom_call.1} parent=1 // pred_check_branch
      %34 = sbr.rel (0) target = $region13
    $region12: #{tpu_custom_call.1} parent=1 // pred_region
      %36 = vsyncadd [#allocation8], 0
      %s38 = sshll.u32 %s2, 4
      %s39 = int_to_ptr.hbm [resolvable:$true] %s38
      %s40 = sshll.u32 [#allocation7], 4
      %s41 = int_to_ptr.vmem [resolvable:$true] %s40
      %43 = dma.hbm_to_vmem [thread:$0]  %s39, 16, %s41, [#allocation8]
    $region13: #{tpu_custom_call.1} parent=1 // pred_fallthru
      _
    // Predicated region
    $region14: #{tpu_custom_call.1} parent=1 // pred_check
      _
    $region15: #{tpu_custom_call.1} parent=1 // pred_check_branch
      %45 = sbr.rel (0) target = $region17
    $region16: #{tpu_custom_call.1} parent=1 // pred_region
      %47 = vsyncadd [#allocation8], 0
      %s49 = sshll.u32 %s3, 4
      %s50 = int_to_ptr.hbm [resolvable:$true] %s49
      %s51 = sshll.u32 [#allocation9], 4
      %s52 = int_to_ptr.vmem [resolvable:$true] %s51
      %54 = dma.hbm_to_vmem [thread:$0]  %s50, 16, %s52, [#allocation8]
    $region17: #{tpu_custom_call.1} parent=1 // pred_fallthru
      _
    // Predicated region
    $region18: #{tpu_custom_call.1} parent=1 // pred_check
      _
    $region19: #{tpu_custom_call.1} parent=1 // pred_check_branch
      %56 = sbr.rel (0) target = $region21
    $region20: #{tpu_custom_call.1} parent=1 // pred_region
      %58 = vsyncadd [#allocation11], 0
      %s60 = sshll.u32 %s4, 4
      %s61 = int_to_ptr.hbm [resolvable:$true] %s60
      %s62 = sshll.u32 [#allocation10], 4
      %s63 = int_to_ptr.vmem [resolvable:$true] %s62
      %65 = dma.hbm_to_vmem [thread:$0]  %s61, 16, %s63, [#allocation11]
    $region21: #{tpu_custom_call.1} parent=1 // pred_fallthru
      _
    // Predicated region
    $region22: #{tpu_custom_call.1} parent=1 // pred_check
      _
    $region23: #{tpu_custom_call.1} parent=1 // pred_check_branch
      %67 = sbr.rel (0) target = $region25
    $region24: #{tpu_custom_call.1} parent=1 // pred_region
      %69 = dma.done [#allocation5], 16
    $region25: #{tpu_custom_call.1} parent=1 // pred_fallthru
      _
    // Predicated region
    $region26: #{tpu_custom_call.1} parent=1 // pred_check
      _
    $region27: #{tpu_custom_call.1} parent=1 // pred_check_branch
      %71 = sbr.rel (0) target = $region29
    $region28: #{tpu_custom_call.1} parent=1 // pred_region
      %73 = dma.done [#allocation8], 16
    $region29: #{tpu_custom_call.1} parent=1 // pred_fallthru
      _
    // Predicated region
    $region30: #{tpu_custom_call.1} parent=1 // pred_check
      _
    $region31: #{tpu_custom_call.1} parent=1 // pred_check_branch
      %75 = sbr.rel (0) target = $region33
    $region32: #{tpu_custom_call.1} parent=1 // pred_region
      %77 = dma.done [#allocation8], 16
    $region33: #{tpu_custom_call.1} parent=1 // pred_fallthru
      _
    // Predicated region
    $region34: #{tpu_custom_call.1} parent=1 // pred_check
      _
    $region35: #{tpu_custom_call.1} parent=1 // pred_check_branch
      %79 = sbr.rel (0) target = $region37
    $region36: #{tpu_custom_call.1} parent=1 // pred_region
      %81 = dma.done [#allocation11], 16
    $region37: #{tpu_custom_call.1} parent=1 // pred_fallthru
      _
    %p82 = scmp.eq.s32.totalorder 0, 0
    // Predicated region
    $region38: #{tpu_custom_call.1} parent=1 // pred_check
      %p83 = pneg %p82
    $region39: #{tpu_custom_call.1} parent=1 // pred_check_branch
      %85 = sbr.rel (%p83) target = $region41
    $region40: #{tpu_custom_call.1} parent=1 // pred_region
      %86 = vst [vmem:[#allocation2] sm:$0x1] 0.0
      %87 = vst [vmem:[#allocation3] sm:$0x1] 0.0
    $region41: #{tpu_custom_call.1} parent=1 // pred_fallthru
      _
    %v88 = vld [vmem:[%s0] sm:$0x3]
    %v89 = vld [vmem:[#allocation2] sm:$0x1]
    %vm90 = vcmask 1041408
    %v91 = vsel %vm90, %v88, 0.0
    %v92 = vrot.slane %v91, 4
    %v93 = vadd.f32 %v91, %v92
    %v94 = vrot.slane %v93, 2
    %v95 = vadd.f32 %v93, %v94
    %v96 = vrot.slane %v95, 1
    %v97 = vadd.f32 %v95, %v96
    %v98 = vadd.f32 %v89, %v97
    %99 = vst [vmem:[#allocation2] sm:$0x1] %v98
    %v100 = vld [vmem:[#allocation3] sm:$0x1]
    %v101 = vmul.f32 %v88, %v88
    %v102 = vsel %vm90, %v101, 0.0
    %v103 = vrot.slane %v102, 4
    %v104 = vadd.f32 %v102, %v103
    %v105 = vrot.slane %v104, 2
    %v106 = vadd.f32 %v104, %v105
    %v107 = vrot.slane %v106, 1
    %v108 = vadd.f32 %v106, %v107
    %v109 = vadd.f32 %v100, %v108
    %110 = vst [vmem:[#allocation3] sm:$0x1] %v109
    // Predicated region
    $region42: #{tpu_custom_call.1} parent=1 // pred_check
      %p111 = pneg %p82
    $region43: #{tpu_custom_call.1} parent=1 // pred_check_branch
      %113 = sbr.rel (%p111) target = $region45
    $region44: #{tpu_custom_call.1} parent=1 // pred_region
      %v114 = vld [vmem:[#allocation2] sm:$0x1]
      %v115 = vld [vmem:[#allocation3] sm:$0x1]
      %117 = vrot.lane.b32.xlu0 %v114, 96
      %v118 = vpop.permute.xlu0 %117
      %v120 = vadd.f32 %v114, %v118
      %122 = vrot.lane.b32.xlu0 %v115, 96
      %v123 = vpop.permute.xlu0 %122
      %v125 = vadd.f32 %v115, %v123
      %126 = vrot.lane.b32.xlu0 %v114, 64
      %v127 = vpop.permute.xlu0 %126
      %v129 = vadd.f32 %v120, %v127
      %130 = vrot.lane.b32.xlu0 %v115, 64
      %v131 = vpop.permute.xlu0 %130
      %v133 = vadd.f32 %v125, %v131
      %134 = vrot.lane.b32.xlu0 %v114, 32
      %v135 = vpop.permute.xlu0 %134
      %v137 = vadd.f32 %v129, %v135
      %138 = vrot.lane.b32.xlu0 %v115, 32
      %v139 = vpop.permute.xlu0 %138
      %v141 = vadd.f32 %v133, %v139
      %v142 = vlaneseq
      %v143 = vand.u32 %v142, 127
      %vm144 = vcmp.ge.s32.totalorder %v143, 4
      %vm145 = vcmp.lt.s32.totalorder %v143, 20
      %vm146 = vmand %vm144, %vm145
      %v147 = vld [vmem:[#allocation4] sm:$0x1]
      %v148 = vsel %vm146, %v137, 0.0
      %v149 = vadd.f32 %v147, %v148
      %vm150 = vcmask 253952
      %151 = vst.msk [vmem:[#allocation12] sm:$0x1] %vm150, %v149
      %v152 = vld [vmem:[#allocation7] sm:$0x1]
      %v153 = vsel %vm146, %v141, 0.0
      %v154 = vadd.f32 %v152, %v153
      %155 = vst.msk [vmem:[#allocation13] sm:$0x1] %vm150, %v154
      %v156 = vld [vmem:[#allocation9] sm:$0x1]
      %158 = vrot.lane.b32.xlu0 %v137, 124
      %v159 = vpop.permute.xlu0 %158
      %v161 = vadd.f32 %v156, %v159
      %162 = vrot.lane.b32.xlu0 %v137, 120
      %v163 = vpop.permute.xlu0 %162
      %v165 = vadd.f32 %v161, %v163
      %vm166 = vcmask 24576
      %167 = vst.msk [vmem:[#allocation15] sm:$0x1] %vm166, %v165
      %v168 = vld [vmem:[#allocation10] sm:$0x1]
      %170 = vrot.lane.b32.xlu0 %v141, 124
      %v171 = vpop.permute.xlu0 %170
      %v173 = vadd.f32 %v168, %v171
      %174 = vrot.lane.b32.xlu0 %v141, 120
      %v175 = vpop.permute.xlu0 %174
      %v177 = vadd.f32 %v173, %v175
      %178 = vst.msk [vmem:[#allocation16] sm:$0x1] %vm166, %v177
    $region45: #{tpu_custom_call.1} parent=1 // pred_fallthru
      _
    // Predicated region
    $region46: #{tpu_custom_call.1} parent=1 // pred_check
      _
    $region47: #{tpu_custom_call.1} parent=1 // pred_check_branch
      %180 = sbr.rel (0) target = $region49
    $region48: #{tpu_custom_call.1} parent=1 // pred_region
      %182 = vsyncadd [#allocation6], 0
      %s184 = sshll.u32 [#allocation12], 4
      %s185 = int_to_ptr.vmem [resolvable:$true] %s184
      %s186 = sshll.u32 %s5, 4
      %s187 = int_to_ptr.hbm [resolvable:$true] %s186
      %189 = dma.vmem_to_hbm [thread:$0]  %s185, 16, %s187, [#allocation6]
    $region49: #{tpu_custom_call.1} parent=1 // pred_fallthru
      _
    // Predicated region
    $region50: #{tpu_custom_call.1} parent=1 // pred_check
      _
    $region51: #{tpu_custom_call.1} parent=1 // pred_check_branch
      %191 = sbr.rel (0) target = $region53
    $region52: #{tpu_custom_call.1} parent=1 // pred_region
      %193 = vsyncadd [#allocation14], 0
      %s195 = sshll.u32 [#allocation13], 4
      %s196 = int_to_ptr.vmem [resolvable:$true] %s195
      %s197 = sshll.u32 %s6, 4
      %s198 = int_to_ptr.hbm [resolvable:$true] %s197
      %200 = dma.vmem_to_hbm [thread:$0]  %s196, 16, %s198, [#allocation14]
    $region53: #{tpu_custom_call.1} parent=1 // pred_fallthru
      _
    // Predicated region
    $region54: #{tpu_custom_call.1} parent=1 // pred_check
      _
    $region55: #{tpu_custom_call.1} parent=1 // pred_check_branch
      %202 = sbr.rel (0) target = $region57
    $region56: #{tpu_custom_call.1} parent=1 // pred_region
      %204 = vsyncadd [#allocation14], 0
      %s206 = sshll.u32 [#allocation15], 4
      %s207 = int_to_ptr.vmem [resolvable:$true] %s206
      %s208 = sshll.u32 %s7, 4
      %s209 = int_to_ptr.hbm [resolvable:$true] %s208
      %211 = dma.vmem_to_hbm [thread:$0]  %s207, 16, %s209, [#allocation14]
    $region57: #{tpu_custom_call.1} parent=1 // pred_fallthru
      _
    // Predicated region
    $region58: #{tpu_custom_call.1} parent=1 // pred_check
      _
    $region59: #{tpu_custom_call.1} parent=1 // pred_check_branch
      %213 = sbr.rel (0) target = $region61
    $region60: #{tpu_custom_call.1} parent=1 // pred_region
      %215 = vsyncadd [#allocation17], 0
      %s217 = sshll.u32 [#allocation16], 4
      %s218 = int_to_ptr.vmem [resolvable:$true] %s217
      %s219 = sshll.u32 %s8, 4
      %s220 = int_to_ptr.hbm [resolvable:$true] %s219
      %222 = dma.vmem_to_hbm [thread:$0]  %s218, 16, %s220, [#allocation17]
    $region61: #{tpu_custom_call.1} parent=1 // pred_fallthru
      _
    // Predicated region
    $region62: #{tpu_custom_call.1} parent=1 // pred_check
      _
    $region63: #{tpu_custom_call.1} parent=1 // pred_check_branch
      %224 = sbr.rel (0) target = $region65
    $region64: #{tpu_custom_call.1} parent=1 // pred_region
      %226 = dma.done [#allocation6], 16
    $region65: #{tpu_custom_call.1} parent=1 // pred_fallthru
      _
    // Predicated region
    $region66: #{tpu_custom_call.1} parent=1 // pred_check
      _
    $region67: #{tpu_custom_call.1} parent=1 // pred_check_branch
      %228 = sbr.rel (0) target = $region69
    $region68: #{tpu_custom_call.1} parent=1 // pred_region
      %230 = dma.done [#allocation14], 16
    $region69: #{tpu_custom_call.1} parent=1 // pred_fallthru
      _
    // Predicated region
    $region70: #{tpu_custom_call.1} parent=1 // pred_check
      _
    $region71: #{tpu_custom_call.1} parent=1 // pred_check_branch
      %232 = sbr.rel (0) target = $region73
    $region72: #{tpu_custom_call.1} parent=1 // pred_region
      %234 = dma.done [#allocation14], 16
    $region73: #{tpu_custom_call.1} parent=1 // pred_fallthru
      _
    // Predicated region
    $region74: #{tpu_custom_call.1} parent=1 // pred_check
      _
    $region75: #{tpu_custom_call.1} parent=1 // pred_check_branch
      %236 = sbr.rel (0) target = $region77
    $region76: #{tpu_custom_call.1} parent=1 // pred_region
      %238 = dma.done [#allocation17], 16
    $region77: #{tpu_custom_call.1} parent=1 // pred_fallthru
      _
    %239 = vsyncpa [#allocation5], 1
    %240 = vsyncpa [#allocation8], 1
    %241 = vsyncpa [#allocation11], 1
    %242 = vsyncpa [#allocation6], 1
    %243 = vsyncpa [#allocation14], 1
    %244 = vsyncpa [#allocation17], 1

</llo_original>
